<compile_context>
chip_gen: v7x
topology: tpu7x:2x2x1
jax: 0.10.0
libtpu: 0.0.40
codegen_flags: <defaults>
</compile_context>

<pallas_src>
import functools

import jax
import jax.numpy as jnp
from jax.experimental import pallas as pl
from jax.experimental.pallas import tpu as pltpu

THRESHOLD = 1.0  # snn.Leaky default threshold


def fcsnn_kernel(x_ref, w1_ref, b1_ref, w2_ref, b2_ref, spk_ref, mem_ref):
    # Layer 1: Linear -> Leaky. Membrane starts at zero every forward() call,
    # so mem1 == cur1 (no leak term, no reset contribution on the first step).
    cur1 = (
        jnp.dot(x_ref[...], w1_ref[...], preferred_element_type=jnp.float32)
        + b1_ref[...]
    )
    spk1 = (cur1 - THRESHOLD > 0.0).astype(jnp.float32)

    # Layer 2: Linear -> Leaky (same zero-initial-membrane semantics).
    cur2 = (
        jnp.dot(spk1, w2_ref[...], preferred_element_type=jnp.float32)
        + b2_ref[...]
    )
    spk_ref[...] = (cur2 - THRESHOLD > 0.0).astype(spk_ref.dtype)  # bf16, lossless 0/1
    mem_ref[...] = cur2


def _round_up(n, m):
    return ((n + m - 1) // m) * m


def _pad2d(a, rows, cols):
    r, c = a.shape
    if r == rows and c == cols:
        return a
    return jnp.pad(a, ((0, rows - r), (0, cols - c)))


def _choose_batch_tile(B, batch_tile):
    """Batch tile: multiple of 16 (f32 sublanes + bf16 spk packing), and when the
    whole batch would fit in one tile, split it in two so the single 'parallel'
    grid axis can be sharded across v7x's 2 TensorCores."""
    bt = max(16, _round_up(int(batch_tile), 16))
    if B <= 16:
        return B  # block dim == full array dim is always legal
    half = _round_up(-(-B // 2), 16)
    return min(bt, half)


@functools.partial(jax.jit, static_argnames=("batch_tile",))
def fcsnn_forward(x, w1, b1, w2, b2, *, batch_tile=1024):
    """Single fcSNN forward step.

    x: (B, F); w1: (F, H); b1: (1, H); w2: (H, O); b2: (1, O).
    Returns (spk2, mem2): spk2 (B, O) bf16 (exact 0/1), mem2 (B, O) f32.
    """
    B, F = x.shape
    H = w1.shape[1]
    O = w2.shape[1]

    # Pad only the hidden dim (weights/biases, tiny & one-time). Padded hidden
    # columns get zero weight and zero bias -> cur1 = 0 -> never spike -> exact.
    Hp = _round_up(H, 128)

    TB = _choose_batch_tile(B, batch_tile)
    nb = pl.cdiv(B, TB)

    xf = x.astype(jnp.float32)                       # no batch/F padding
    w1p = _pad2d(w1.astype(jnp.float32), F, Hp)
    b1p = _pad2d(b1.astype(jnp.float32), 1, Hp)
    w2p = _pad2d(w2.astype(jnp.float32), Hp, O)
    b2f = b2.astype(jnp.float32)

    spk, mem = pl.pallas_call(
        fcsnn_kernel,
        out_shape=(
            jax.ShapeDtypeStruct((B, O), jnp.bfloat16),  # spk2 (true width, bf16)
            jax.ShapeDtypeStruct((B, O), jnp.float32),   # mem2 (true width)
        ),
        grid=(nb,),
        in_specs=[
            pl.BlockSpec((TB, F), lambda i: (i, 0)),    # x: tiled over batch, unpadded
            pl.BlockSpec((F, Hp), lambda i: (0, 0)),    # w1: constant -> VMEM resident
            pl.BlockSpec((1, Hp), lambda i: (0, 0)),    # b1
            pl.BlockSpec((Hp, O), lambda i: (0, 0)),    # w2
            pl.BlockSpec((1, O), lambda i: (0, 0)),     # b2
        ],
        out_specs=(
            pl.BlockSpec((TB, O), lambda i: (i, 0)),
            pl.BlockSpec((TB, O), lambda i: (i, 0)),
        ),
        compiler_params=pltpu.CompilerParams(
            dimension_semantics=("parallel",),
        ),
    )(xf, w1p, b1p, w2p, b2f)

    return spk, mem


def fcsnn_forward_pass(x, w1, b1, w2, b2, num_steps):
    """Equivalent of the reference `forward_pass` (num_steps repeated model(data) calls).

    fcSNN.forward re-initializes both membranes to zero on every call, so all
    `num_steps` outputs are identical: run the fused kernel ONCE and broadcast
    instead of paying num_steps launches and weight reloads.
    If the membrane were carried across steps (init_hidden-style), the correct
    fusion would be an in-kernel fori_loop carry: mem = beta*mem + cur - spk*thr.
    """
    spk, mem = fcsnn_forward(x, w1, b1, w2, b2)
    return (
        jnp.broadcast_to(spk, (num_steps,) + spk.shape),
        jnp.broadcast_to(mem, (num_steps,) + mem.shape),
    )


def reference_forward(x, w1, b1, w2, b2):
    cur1 = x @ w1 + b1
    spk1 = (cur1 - THRESHOLD > 0.0).astype(jnp.float32)
    cur2 = spk1 @ w2 + b2
    spk2 = (cur2 - THRESHOLD > 0.0).astype(jnp.float32)
    return spk2, cur2


def _make_params(key, in_features, n_hidden, n_out):
    kw1, kb1, kw2, kb2 = jax.random.split(key, 4)
    bound1 = 1.0 / jnp.sqrt(jnp.float32(in_features))
    bound2 = 1.0 / jnp.sqrt(jnp.float32(n_hidden))
    w1 = jax.random.uniform(kw1, (in_features, n_hidden), jnp.float32, -bound1, bound1)
    b1 = jax.random.uniform(kb1, (1, n_hidden), jnp.float32, -bound1, bound1)
    w2 = jax.random.uniform(kw2, (n_hidden, n_out), jnp.float32, -bound2, bound2)
    b2 = jax.random.uniform(kb2, (1, n_out), jnp.float32, -bound2, bound2)
    return w1, b1, w2, b2


if __name__ == "__main__":
    key = jax.random.PRNGKey(0)
    k_params, k_x, k_params2, k_x2 = jax.random.split(key, 4)

    # --- Case 1: small shapes consistent with the fully-connected module -------
    batch, in_features, n_hidden, n_out, num_steps = 8, 128, 64, 10, 4
    w1, b1, w2, b2 = _make_params(k_params, in_features, n_hidden, n_out)
    x = jax.random.uniform(k_x, (batch, in_features), jnp.float32, 0.0, 2.0)

    spk2, mem2 = jax.block_until_ready(fcsnn_forward(x, w1, b1, w2, b2))
    spk_ref, mem_ref = reference_forward(x, w1, b1, w2, b2)
    assert spk2.shape == (batch, n_out) and mem2.shape == (batch, n_out)
    assert jnp.allclose(mem2, mem_ref, atol=1e-5), "membrane mismatch"
    assert jnp.array_equal(spk2.astype(jnp.float32), spk_ref), "spike mismatch"

    # Multi-step forward_pass (all steps identical since membranes reset per call).
    spk_rec, mem_rec = jax.block_until_ready(
        fcsnn_forward_pass(x, w1, b1, w2, b2, num_steps)
    )
    assert spk_rec.shape == (num_steps, batch, n_out)
    assert jnp.allclose(mem_rec[0], mem_ref, atol=1e-5)
    assert jnp.array_equal(spk_rec[-1].astype(jnp.float32), spk_ref)

    # --- Case 2: exercise multi-tile grid, partial last batch tile, unaligned F --
    batch2, in_features2, n_hidden2, n_out2 = 40, 96, 48, 10
    w1b, b1b, w2b, b2b = _make_params(k_params2, in_features2, n_hidden2, n_out2)
    x2 = jax.random.uniform(k_x2, (batch2, in_features2), jnp.float32, 0.0, 2.0)

    spk2b, mem2b = jax.block_until_ready(fcsnn_forward(x2, w1b, b1b, w2b, b2b))
    spk_ref2, mem_ref2 = reference_forward(x2, w1b, b1b, w2b, b2b)
    assert spk2b.shape == (batch2, n_out2) and mem2b.shape == (batch2, n_out2)
    assert jnp.allclose(mem2b, mem_ref2, atol=1e-5), "membrane mismatch (case 2)"
    assert jnp.array_equal(spk2b.astype(jnp.float32), spk_ref2), "spike mismatch (case 2)"

    print("KERNEL_OK")
</pallas_src>

<mosaic_0001>
module attributes {stable_mosaic.version = 11 : i64} {
  func.func @fcsnn_kernel(%arg0: i32, %arg1: memref<8x128xf32, #tpu.memory_space<vmem>>, %arg2: memref<128x128xf32, #tpu.memory_space<vmem>>, %arg3: memref<1x128xf32, #tpu.memory_space<vmem>>, %arg4: memref<128x10xf32, #tpu.memory_space<vmem>>, %arg5: memref<1x10xf32, #tpu.memory_space<vmem>>, %arg6: memref<8x10xbf16, #tpu.memory_space<vmem>>, %arg7: memref<8x10xf32, #tpu.memory_space<vmem>>) attributes {dimension_semantics = [#tpu.dimension_semantics<parallel>], iteration_bounds = array<i64: 1>, scalar_prefetch = 0 : i64, scratch_operands = 0 : i64, tpu.core_type = #tpu.core_type<tc>, window_params = [{transform_indices = @transform_0, window_bounds = array<i64: 8, 128>}, {pipeline_mode = #tpu.pipeline_mode<synchronous>, transform_indices = @transform_1, window_bounds = array<i64: 128, 128>}, {pipeline_mode = #tpu.pipeline_mode<synchronous>, transform_indices = @transform_2, window_bounds = array<i64: 1, 128>}, {pipeline_mode = #tpu.pipeline_mode<synchronous>, transform_indices = @transform_3, window_bounds = array<i64: 128, 10>}, {pipeline_mode = #tpu.pipeline_mode<synchronous>, transform_indices = @transform_4, window_bounds = array<i64: 1, 10>}, {transform_indices = @transform_5, window_bounds = array<i64: 8, 10>}, {transform_indices = @transform_6, window_bounds = array<i64: 8, 10>}]} {
    %c0 = arith.constant 0 : index
    %c0_0 = arith.constant 0 : index
    %0 = vector.load %arg1[%c0, %c0_0] : memref<8x128xf32, #tpu.memory_space<vmem>>, vector<8x128xf32>
    %c0_1 = arith.constant 0 : index
    %c0_2 = arith.constant 0 : index
    %1 = vector.load %arg2[%c0_1, %c0_2] : memref<128x128xf32, #tpu.memory_space<vmem>>, vector<128x128xf32>
    %cst = arith.constant dense<0.000000e+00> : vector<8x128xf32>
    %2 = tpu.matmul %0, %1, %cst {dimension_numbers = #tpu.dot_dimension_numbers<[1], [0], [0], [1], [0, 0, 1, 1], [], []>} : vector<8x128xf32>, vector<128x128xf32>, vector<8x128xf32> -> vector<8x128xf32>
    %c0_3 = arith.constant 0 : index
    %c0_4 = arith.constant 0 : index
    %3 = vector.load %arg3[%c0_3, %c0_4] : memref<1x128xf32, #tpu.memory_space<vmem>>, vector<1x128xf32>
    %4 = vector.broadcast %3 : vector<1x128xf32> to vector<8x128xf32>
    %5 = arith.addf %2, %4 : vector<8x128xf32>
    %cst_5 = arith.constant 1.000000e+00 : f32
    %6 = vector.broadcast %cst_5 : f32 to vector<8x128xf32>
    %7 = arith.subf %5, %6 : vector<8x128xf32>
    %cst_6 = arith.constant 0.000000e+00 : f32
    %8 = vector.broadcast %cst_6 : f32 to vector<8x128xf32>
    %9 = arith.cmpf ogt, %7, %8 : vector<8x128xf32>
    %10 = arith.extui %9 : vector<8x128xi1> to vector<8x128xi32>
    %11 = arith.sitofp %10 : vector<8x128xi32> to vector<8x128xf32>
    %c0_7 = arith.constant 0 : index
    %c0_8 = arith.constant 0 : index
    %12 = vector.load %arg4[%c0_7, %c0_8] : memref<128x10xf32, #tpu.memory_space<vmem>>, vector<128x10xf32>
    %cst_9 = arith.constant dense<0.000000e+00> : vector<8x10xf32>
    %13 = tpu.matmul %11, %12, %cst_9 {dimension_numbers = #tpu.dot_dimension_numbers<[1], [0], [0], [1], [0, 0, 1, 1], [], []>} : vector<8x128xf32>, vector<128x10xf32>, vector<8x10xf32> -> vector<8x10xf32>
    %c0_10 = arith.constant 0 : index
    %c0_11 = arith.constant 0 : index
    %14 = vector.load %arg5[%c0_10, %c0_11] : memref<1x10xf32, #tpu.memory_space<vmem>>, vector<1x10xf32>
    %15 = vector.broadcast %14 : vector<1x10xf32> to vector<8x10xf32>
    %16 = arith.addf %13, %15 : vector<8x10xf32>
    %cst_12 = arith.constant 1.000000e+00 : f32
    %17 = vector.broadcast %cst_12 : f32 to vector<8x10xf32>
    %18 = arith.subf %16, %17 : vector<8x10xf32>
    %cst_13 = arith.constant 0.000000e+00 : f32
    %19 = vector.broadcast %cst_13 : f32 to vector<8x10xf32>
    %20 = arith.cmpf ogt, %18, %19 : vector<8x10xf32>
    %21 = arith.extui %20 : vector<8x10xi1> to vector<8x10xi32>
    %22 = arith.sitofp %21 : vector<8x10xi32> to vector<8x10xf32>
    %23 = arith.truncf %22 : vector<8x10xf32> to vector<8x10xbf16>
    %c0_14 = arith.constant 0 : index
    %c0_15 = arith.constant 0 : index
    %24 = vector.load %arg6[%c0_14, %c0_15] : memref<8x10xbf16, #tpu.memory_space<vmem>>, vector<8x10xbf16>
    tpu.vector_store %arg6[%c0_14, %c0_15], %23 {strides = array<i32>} : memref<8x10xbf16, #tpu.memory_space<vmem>>, vector<8x10xbf16>,
    %c0_16 = arith.constant 0 : index
    %c0_17 = arith.constant 0 : index
    %25 = vector.load %arg7[%c0_16, %c0_17] : memref<8x10xf32, #tpu.memory_space<vmem>>, vector<8x10xf32>
    tpu.vector_store %arg7[%c0_16, %c0_17], %16 {strides = array<i32>} : memref<8x10xf32, #tpu.memory_space<vmem>>, vector<8x10xf32>,
    return
  }
  func.func @transform_0(%arg0: i32) -> (i32, i32) {
    %c0_i32 = arith.constant 0 : i32
    %c0_i32_0 = arith.constant 0 : i32
    return %arg0, %c0_i32 : i32, i32
  }
  func.func @transform_1(%arg0: i32) -> (i32, i32) {
    %c0_i32 = arith.constant 0 : i32
    %c0_i32_0 = arith.constant 0 : i32
    %c0_i32_1 = arith.constant 0 : i32
    return %c0_i32, %c0_i32_0 : i32, i32
  }
  func.func @transform_2(%arg0: i32) -> (i32, i32) {
    %c0_i32 = arith.constant 0 : i32
    %c0_i32_0 = arith.constant 0 : i32
    %c0_i32_1 = arith.constant 0 : i32
    return %c0_i32, %c0_i32_0 : i32, i32
  }
  func.func @transform_3(%arg0: i32) -> (i32, i32) {
    %c0_i32 = arith.constant 0 : i32
    %c0_i32_0 = arith.constant 0 : i32
    %c0_i32_1 = arith.constant 0 : i32
    return %c0_i32, %c0_i32_0 : i32, i32
  }
  func.func @transform_4(%arg0: i32) -> (i32, i32) {
    %c0_i32 = arith.constant 0 : i32
    %c0_i32_0 = arith.constant 0 : i32
    %c0_i32_1 = arith.constant 0 : i32
    return %c0_i32, %c0_i32_0 : i32, i32
  }
  func.func @transform_5(%arg0: i32) -> (i32, i32) {
    %c0_i32 = arith.constant 0 : i32
    %c0_i32_0 = arith.constant 0 : i32
    return %arg0, %c0_i32 : i32, i32
  }
  func.func @transform_6(%arg0: i32) -> (i32, i32) {
    %c0_i32 = arith.constant 0 : i32
    %c0_i32_0 = arith.constant 0 : i32
    return %arg0, %c0_i32 : i32, i32
  }
}

</mosaic_0001>

<llo_original>
// kernel: fcsnn_forward.1
$region0: #{fcsnn_forward.1}
  #allocation0 [shape = 'u32[]', space=smem, size = 0x4, offset = 0x4, fixed_abs, tag = 'smem constant byte address 0x4 - core index']
  #allocation1 [shape = 'u32[144,128]{1,0:T(1,128)}', space=vmem, size = 0x12000, scoped, tag = 'internal scratch']
  %s0 = inlined_call_operand.vmem [shape: f32[8,128], index: 0, kind: input, shape index: {}]
  %s1 = inlined_call_operand.vmem [shape: f32[128,128], index: 1, kind: input, shape index: {}]
  %s2 = inlined_call_operand.vmem [shape: f32[1,128], index: 2, kind: input, shape index: {}]
  %s3 = inlined_call_operand.vmem [shape: f32[128,10], index: 3, kind: input, shape index: {}]
  %s4 = inlined_call_operand.vmem [shape: f32[1,10], index: 4, kind: input, shape index: {}]
  %s5 = inlined_call_operand.hbm [shape: bf16[8,10], index: 5, kind: output, shape index: {0}]
  %s6 = inlined_call_operand.hbm [shape: f32[8,10], index: 6, kind: output, shape index: {1}]
  %7 = xla_tuple %s5, %s6
  %s8 = sld [smem:[#allocation0]]
  $region38: #{fcsnn_forward.1} parent=0
    _
  %s10 = ssub.s32 1, %s8
  %s11 = scalar_select 0, %s10, %s8
  $region1: #{fcsnn_forward.1} parent=0
    #allocation2 [shape = 'u8[2048]{0}', space=vmem, size = 0x800, scoped, tag = 'output window, operand 0, single buffered']
    #allocation3 [shape = 's32[1]{0}', space=sflag, size = 0x4, scoped, tag = 'scoped memory for fcsnn_forward.1']
    #allocation4 [shape = 'u8[4096]{0}', space=vmem, size = 0x1000, scoped, tag = 'output window, operand 1, single buffered']
    #allocation5 [shape = 's32[1]{0}', space=sflag, size = 0x4, scoped, tag = 'scoped memory for fcsnn_forward.1']
    %12 = vsyncpa [#allocation3], 0
    %13 = vsyncpa [#allocation5], 0
    // Predicated region
    $region2: #{fcsnn_forward.1} parent=1 // pred_check
      _
    $region3: #{fcsnn_forward.1} parent=1 // pred_check_branch
      %15 = sbr.rel (0) target = $region5
    $region4: #{fcsnn_forward.1} parent=1 // pred_region
      _
    $region5: #{fcsnn_forward.1} parent=1 // pred_fallthru
      _
    // Predicated region
    $region6: #{fcsnn_forward.1} parent=1 // pred_check
      _
    $region7: #{fcsnn_forward.1} parent=1 // pred_check_branch
      %17 = sbr.rel (0) target = $region9
    $region8: #{fcsnn_forward.1} parent=1 // pred_region
      _
    $region9: #{fcsnn_forward.1} parent=1 // pred_fallthru
      _
    // Predicated region
    $region10: #{fcsnn_forward.1} parent=1 // pred_check
      _
    $region11: #{fcsnn_forward.1} parent=1 // pred_check_branch
      %19 = sbr.rel (0) target = $region13
    $region12: #{fcsnn_forward.1} parent=1 // pred_region
      _
    $region13: #{fcsnn_forward.1} parent=1 // pred_fallthru
      _
    // Predicated region
    $region14: #{fcsnn_forward.1} parent=1 // pred_check
      _
    $region15: #{fcsnn_forward.1} parent=1 // pred_check_branch
      %21 = sbr.rel (0) target = $region17
    $region16: #{fcsnn_forward.1} parent=1 // pred_region
      _
    $region17: #{fcsnn_forward.1} parent=1 // pred_fallthru
      _
    // Predicated region
    $region18: #{fcsnn_forward.1} parent=1 // pred_check
      _
    $region19: #{fcsnn_forward.1} parent=1 // pred_check_branch
      %23 = sbr.rel (0) target = $region21
    $region20: #{fcsnn_forward.1} parent=1 // pred_region
      _
    $region21: #{fcsnn_forward.1} parent=1 // pred_fallthru
      _
    %v24 = vld [vmem:[%s0] sm:$0xff]
    %v25 = vld [vmem:[%s1] sm:$0xff]
    %v26 = vld [vmem:[%s1 + $0x8] sm:$0xff]
    %v27 = vld [vmem:[%s1 + $0x10] sm:$0xff]
    %v28 = vld [vmem:[%s1 + $0x18] sm:$0xff]
    %v29 = vld [vmem:[%s1 + $0x20] sm:$0xff]
    %v30 = vld [vmem:[%s1 + $0x28] sm:$0xff]
    %v31 = vld [vmem:[%s1 + $0x30] sm:$0xff]
    %v32 = vld [vmem:[%s1 + $0x38] sm:$0xff]
    %v33 = vld [vmem:[%s1 + $0x40] sm:$0xff]
    %v34 = vld [vmem:[%s1 + $0x48] sm:$0xff]
    %v35 = vld [vmem:[%s1 + $0x50] sm:$0xff]
    %v36 = vld [vmem:[%s1 + $0x58] sm:$0xff]
    %v37 = vld [vmem:[%s1 + $0x60] sm:$0xff]
    %v38 = vld [vmem:[%s1 + $0x68] sm:$0xff]
    %v39 = vld [vmem:[%s1 + $0x70] sm:$0xff]
    %v40 = vld [vmem:[%s1 + $0x78] sm:$0xff]
    %v41 = vld [vmem:[%s2] sm:$0x1]
    %v43 = vlaneseq
    %v44 = vshrl.u32 %v43, 7
    %v45 = vsub.s32 0, %v44
    %v46 = vrot.slane %v41, %v45
    %48 = vmatprep.subr.mxu0 0.0
    %49 = vmatpush1.msra.mxu0 %v25
    %50 = vmatprep.subr.mxu0 0.0
    %51 = vmatpush1.msra.mxu0 %v26
    %52 = vmatprep.subr.mxu0 0.0
    %53 = vmatpush1.msra.mxu0 %v27
    %54 = vmatprep.subr.mxu0 0.0
    %55 = vmatpush1.msra.mxu0 %v28
    %56 = vmatprep.subr.mxu0 0.0
    %57 = vmatpush1.msra.mxu0 %v29
    %58 = vmatprep.subr.mxu0 0.0
    %59 = vmatpush1.msra.mxu0 %v30
    %60 = vmatprep.subr.mxu0 0.0
    %61 = vmatpush1.msra.mxu0 %v31
    %62 = vmatprep.subr.mxu0 0.0
    %63 = vmatpush1.msra.mxu0 %v32
    %64 = vmatprep.subr.mxu0 0.0
    %65 = vmatpush1.msra.mxu0 %v33
    %66 = vmatprep.subr.mxu0 0.0
    %67 = vmatpush1.msra.mxu0 %v34
    %68 = vmatprep.subr.mxu0 0.0
    %69 = vmatpush1.msra.mxu0 %v35
    %70 = vmatprep.subr.mxu0 0.0
    %71 = vmatpush1.msra.mxu0 %v36
    %72 = vmatprep.subr.mxu0 0.0
    %73 = vmatpush1.msra.mxu0 %v37
    %74 = vmatprep.subr.mxu0 0.0
    %75 = vmatpush1.msra.mxu0 %v38
    %76 = vmatprep.subr.mxu0 0.0
    %77 = vmatpush1.msra.mxu0 %v39
    %78 = vmatprep.subr.mxu0 0.0
    %79 = vmatpush1.msra.mxu0 %v40
    %80 = vmatprep.subr.mxu0 0.0
    %81 = vmatpush1.msra.mxu0 0.0
    %82 = vmatprep.subr.mxu0 0.0
    %83 = vmatpush1.msra.mxu0 0.0
    %84 = vmatprep.subr.mxu0 0.0
    %85 = vmatpush1.msra.mxu0 0.0
    %86 = vmatprep.subr.mxu0 0.0
    %87 = vmatpush1.msra.mxu0 0.0
    %88 = vmatprep.subr.mxu0 0.0
    %89 = vmatpush1.msra.mxu0 0.0
    %90 = vmatprep.subr.mxu0 0.0
    %91 = vmatpush1.msra.mxu0 0.0
    %92 = vmatprep.subr.mxu0 0.0
    %93 = vmatpush1.msra.mxu0 0.0
    %94 = vmatprep.subr.mxu0 0.0
    %95 = vmatpush1.msra.mxu0 0.0
    %96 = vmatprep.subr.mxu0 0.0
    %97 = vmatpush1.msra.mxu0 0.0
    %98 = vmatprep.subr.mxu0 0.0
    %99 = vmatpush1.msra.mxu0 0.0
    %100 = vmatprep.subr.mxu0 0.0
    %101 = vmatpush1.msra.mxu0 0.0
    %102 = vmatprep.subr.mxu0 0.0
    %103 = vmatpush1.msra.mxu0 0.0
    %104 = vmatprep.subr.mxu0 0.0
    %105 = vmatpush1.msra.mxu0 0.0
    %106 = vmatprep.subr.mxu0 0.0
    %107 = vmatpush1.msra.mxu0 0.0
    %108 = vmatprep.subr.mxu0 0.0
    %109 = vmatpush1.msra.mxu0 0.0
    %110 = vmatprep.subr.mxu0 0.0
    %111 = vmatpush1.msra.mxu0 0.0
    %112 = vmatprep.mubr.f32.mxu0 0.0
    %113 = vmatmul.mubr.f32.gmra.mrb[0].mxu0 %v24
    %v114 = vpop.f32.mrb[0].mxu0
    %v115 = vadd.f32 %v46, %v114
    %v116 = vpop.f32.mrb[0].mxu0
    %117 = vdwg.mxu0
    %v118 = vsub.f32 %v115, 1.0
    %vm119 = vcmp.gt.f32.partialorder %v118, 0.0
    %v120 = vsel %vm119, 1, 0
    %v121 = vcvt.s32.f32 %v120
    %v122 = vld [vmem:[%s3] sm:$0xff]
    %v123 = vld [vmem:[%s3 + $0x8] sm:$0xff]
    %v124 = vld [vmem:[%s3 + $0x10] sm:$0xff]
    %v125 = vld [vmem:[%s3 + $0x18] sm:$0xff]
    %v126 = vld [vmem:[%s3 + $0x20] sm:$0xff]
    %v127 = vld [vmem:[%s3 + $0x28] sm:$0xff]
    %v128 = vld [vmem:[%s3 + $0x30] sm:$0xff]
    %v129 = vld [vmem:[%s3 + $0x38] sm:$0xff]
    %v130 = vld [vmem:[%s3 + $0x40] sm:$0xff]
    %v131 = vld [vmem:[%s3 + $0x48] sm:$0xff]
    %v132 = vld [vmem:[%s3 + $0x50] sm:$0xff]
    %v133 = vld [vmem:[%s3 + $0x58] sm:$0xff]
    %v134 = vld [vmem:[%s3 + $0x60] sm:$0xff]
    %v135 = vld [vmem:[%s3 + $0x68] sm:$0xff]
    %v136 = vld [vmem:[%s3 + $0x70] sm:$0xff]
    %v137 = vld [vmem:[%s3 + $0x78] sm:$0xff]
    %v138 = vld [vmem:[%s4] sm:$0x1]
    %v140 = vlaneseq
    %v141 = vshrl.u32 %v140, 7
    %v142 = vsub.s32 0, %v141
    %v143 = vrot.slane %v138, %v142
    %145 = vmatprep.subr.mxu0 0.0
    %146 = vmatpush1.msra.mxu0 %v122
    %147 = vmatprep.subr.mxu0 0.0
    %148 = vmatpush1.msra.mxu0 %v123
    %149 = vmatprep.subr.mxu0 0.0
    %150 = vmatpush1.msra.mxu0 %v124
    %151 = vmatprep.subr.mxu0 0.0
    %152 = vmatpush1.msra.mxu0 %v125
    %153 = vmatprep.subr.mxu0 0.0
    %154 = vmatpush1.msra.mxu0 %v126
    %155 = vmatprep.subr.mxu0 0.0
    %156 = vmatpush1.msra.mxu0 %v127
    %157 = vmatprep.subr.mxu0 0.0
    %158 = vmatpush1.msra.mxu0 %v128
    %159 = vmatprep.subr.mxu0 0.0
    %160 = vmatpush1.msra.mxu0 %v129
    %161 = vmatprep.subr.mxu0 0.0
    %162 = vmatpush1.msra.mxu0 %v130
    %163 = vmatprep.subr.mxu0 0.0
    %164 = vmatpush1.msra.mxu0 %v131
    %165 = vmatprep.subr.mxu0 0.0
    %166 = vmatpush1.msra.mxu0 %v132
    %167 = vmatprep.subr.mxu0 0.0
    %168 = vmatpush1.msra.mxu0 %v133
    %169 = vmatprep.subr.mxu0 0.0
    %170 = vmatpush1.msra.mxu0 %v134
    %171 = vmatprep.subr.mxu0 0.0
    %172 = vmatpush1.msra.mxu0 %v135
    %173 = vmatprep.subr.mxu0 0.0
    %174 = vmatpush1.msra.mxu0 %v136
    %175 = vmatprep.subr.mxu0 0.0
    %176 = vmatpush1.msra.mxu0 %v137
    %177 = vmatprep.subr.mxu0 0.0
    %178 = vmatpush1.msra.mxu0 0.0
    %179 = vmatprep.subr.mxu0 0.0
    %180 = vmatpush1.msra.mxu0 0.0
    %181 = vmatprep.subr.mxu0 0.0
    %182 = vmatpush1.msra.mxu0 0.0
    %183 = vmatprep.subr.mxu0 0.0
    %184 = vmatpush1.msra.mxu0 0.0
    %185 = vmatprep.subr.mxu0 0.0
    %186 = vmatpush1.msra.mxu0 0.0
    %187 = vmatprep.subr.mxu0 0.0
    %188 = vmatpush1.msra.mxu0 0.0
    %189 = vmatprep.subr.mxu0 0.0
    %190 = vmatpush1.msra.mxu0 0.0
    %191 = vmatprep.subr.mxu0 0.0
    %192 = vmatpush1.msra.mxu0 0.0
    %193 = vmatprep.subr.mxu0 0.0
    %194 = vmatpush1.msra.mxu0 0.0
    %195 = vmatprep.subr.mxu0 0.0
    %196 = vmatpush1.msra.mxu0 0.0
    %197 = vmatprep.subr.mxu0 0.0
    %198 = vmatpush1.msra.mxu0 0.0
    %199 = vmatprep.subr.mxu0 0.0
    %200 = vmatpush1.msra.mxu0 0.0
    %201 = vmatprep.subr.mxu0 0.0
    %202 = vmatpush1.msra.mxu0 0.0
    %203 = vmatprep.subr.mxu0 0.0
    %204 = vmatpush1.msra.mxu0 0.0
    %205 = vmatprep.subr.mxu0 0.0
    %206 = vmatpush1.msra.mxu0 0.0
    %207 = vmatprep.subr.mxu0 0.0
    %208 = vmatpush1.msra.mxu0 0.0
    %209 = vmatprep.mubr.f32.mxu0 0.0
    %210 = vmatmul.mubr.f32.gmra.mrb[0].mxu0 %v121
    %v211 = vpop.f32.mrb[0].mxu0
    %v212 = vadd.f32 %v143, %v211
    %v213 = vpop.f32.mrb[0].mxu0
    %214 = vdwg.mxu0
    %v215 = vsub.f32 %v212, 1.0
    %vm216 = vcmp.gt.f32.partialorder %v215, 0.0
    %v217 = vsel %vm216, 1, 0
    %v218 = vcvt.s32.f32 %v217
    %v219 = vpack.c.bf16 %v218, %v218
    %vm220 = vcmask 76800
    %221 = vst.msk [vmem:[#allocation2] sm:$0xf] %vm220, %v219
    %vm222 = vcmask 80896
    %223 = vst.msk [vmem:[#allocation4] sm:$0xff] %vm222, %v212
    // Predicated region
    $region22: #{fcsnn_forward.1} parent=1 // pred_check
      _
    $region23: #{fcsnn_forward.1} parent=1 // pred_check_branch
      %225 = sbr.rel (0) target = $region25
    $region24: #{fcsnn_forward.1} parent=1 // pred_region
      %s227 = ssub.s32 64, 64
      %228 = vsyncadd [#allocation3], %s227
      %s230 = sshll.u32 [#allocation2], 4
      %s231 = int_to_ptr.vmem [resolvable:$true] %s230
      %233 = dma.vmem_to_hbm [thread:$0]  %s231, 64, %s5, [#allocation3]
    $region25: #{fcsnn_forward.1} parent=1 // pred_fallthru
      _
    // Predicated region
    $region26: #{fcsnn_forward.1} parent=1 // pred_check
      _
    $region27: #{fcsnn_forward.1} parent=1 // pred_check_branch
      %235 = sbr.rel (0) target = $region29
    $region28: #{fcsnn_forward.1} parent=1 // pred_region
      %s237 = ssub.s32 128, 128
      %238 = vsyncadd [#allocation5], %s237
      %s240 = sshll.u32 [#allocation4], 4
      %s241 = int_to_ptr.vmem [resolvable:$true] %s240
      %243 = dma.vmem_to_hbm [thread:$0]  %s241, 128, %s6, [#allocation5]
    $region29: #{fcsnn_forward.1} parent=1 // pred_fallthru
      _
    // Predicated region
    $region30: #{fcsnn_forward.1} parent=1 // pred_check
      _
    $region31: #{fcsnn_forward.1} parent=1 // pred_check_branch
      %245 = sbr.rel (0) target = $region33
    $region32: #{fcsnn_forward.1} parent=1 // pred_region
      %246 = dma.done [#allocation3], 64
    $region33: #{fcsnn_forward.1} parent=1 // pred_fallthru
      _
    // Predicated region
    $region34: #{fcsnn_forward.1} parent=1 // pred_check
      _
    $region35: #{fcsnn_forward.1} parent=1 // pred_check_branch
      %248 = sbr.rel (0) target = $region37
    $region36: #{fcsnn_forward.1} parent=1 // pred_region
      %249 = dma.done [#allocation5], 128
    $region37: #{fcsnn_forward.1} parent=1 // pred_fallthru
      _
    %250 = vsyncpa [#allocation3], 1
    %251 = vsyncpa [#allocation5], 1

</llo_original>
